<compile_context>
chip_gen: v5e
topology: v5e:2x2
jax: 0.10.0
libtpu: 0.0.40
codegen_flags: <defaults>
</compile_context>

<pallas_src>
import jax
import jax.numpy as jnp
from jax.experimental import pallas as pl
from jax.experimental.pallas import tpu as pltpu

_LANE = 128
_MAX_TILE_N = 16384            # <=128 unrolled lane-chunks per grid step
_INPUT_TILE_BUDGET = 24 << 20  # double-buffered input tiles (v7x 64 MiB VMEM safe)
_MAX_TB = 256                  # max rows per block
_NACC = 4                      # independent accumulator chains


def _round_up(x, m):
    return ((x + m - 1) // m) * m


def _sublane_min(itemsizes):
    # Native sublane tile: 8 rows for 4-byte, 16 for 2-byte, 32 for 1-byte dtypes.
    return max(32 // min(itemsizes), 8)


def _choose_fold(B, n, smin, target_rows=256, max_rows=4096):
    """Fold factor G (a divisor of n): reshape (B, n) -> (B*G, n // G)."""
    if n < _LANE:
        return 1
    min_cols = _LANE if n < 8192 else 4 * _LANE
    g_max = min(n // min_cols, max(1, max_rows // max(B, 1)), 4096)
    best = 1
    for g in range(1, g_max + 1):
        if n % g:
            continue
        rows = B * g
        if rows % smin:
            continue
        best = g
        if rows >= target_rows:
            break
    return best


def _pick_tb(R, smin, max_tb):
    """Row-block size -> (TB, nb, needs_row_mask)."""
    max_tb = max(smin, (max_tb // smin) * smin)
    if R <= max_tb:
        if R % smin == 0 and R >= 2 * smin:
            tb = (R // 2) // smin * smin          # prefer >=2 parallel blocks
            while R % tb:
                tb -= smin
            return tb, R // tb, False
        return R, 1, False                        # full-extent row block (legal)
    tb = max_tb
    while tb >= smin:                             # largest aligned divisor
        if R % tb == 0:
            return tb, R // tb, False
        tb -= smin
    tb = min(max_tb, 64)                          # ragged rows -> in-kernel mask
    return tb, -(-R // tb), True


def _pick_tn(n_cols, tb, itemsizes, tile_n):
    if n_cols < _LANE:
        return n_cols                             # tiny feature dim: full extent
    if tile_n is not None:
        tn = max(_LANE, _round_up(int(tile_n), _LANE))
    else:
        per_col = 2 * tb * sum(itemsizes)         # 2x = double buffering
        tn = max(_LANE, (_INPUT_TILE_BUDGET // per_col) // _LANE * _LANE)
        tn = min(tn, _MAX_TILE_N)
    return min(tn, _round_up(n_cols, _LANE))


def _make_kernel(*, weighted, tb, cw, chunks, nacc, n_rem, kt, nb, rows_rem, row_mask):
    needs_col_mask = n_rem < chunks * cw

    def kernel(*refs):
        if weighted:
            gt_ref, pred_ref, w_ref, num_ref, den_ref = refs
        else:
            gt_ref, pred_ref, num_ref = refs
            w_ref = den_ref = None

        k = pl.program_id(1)

        @pl.when(k == 0)
        def _():
            num_ref[...] = jnp.zeros_like(num_ref)
            if weighted:
                den_ref[...] = jnp.zeros_like(den_ref)

        # Resident lane-group accumulators (independent VALU chains).
        num_acc = [num_ref[:, g * cw:(g + 1) * cw] for g in range(nacc)]
        if weighted:
            den_acc = [den_ref[:, g * cw:(g + 1) * cw] for g in range(nacc)]

        lane = None
        not_last = None
        if needs_col_mask:
            lane = jax.lax.broadcasted_iota(jnp.int32, (tb, cw), 1)
            if kt > 1:
                not_last = k != (kt - 1)
        row_ok = None
        if row_mask:
            sub = jax.lax.broadcasted_iota(jnp.int32, (tb, cw), 0)
            b = pl.program_id(0)
            row_ok = jnp.logical_or(b != (nb - 1), sub < rows_rem)

        # Fused elementwise + accumulate, one 128-lane chunk at a time
        # (no full-tile f32 intermediates are materialized).
        for j in range(chunks):
            sl = slice(j * cw, (j + 1) * cw)
            g = gt_ref[:, sl].astype(jnp.float32)
            p = pred_ref[:, sl].astype(jnp.float32)
            if weighted:
                w = w_ref[:, sl].astype(jnp.float32)

            ok = None
            if needs_col_mask and (j + 1) * cw > n_rem:   # static gate per chunk
                col_ok = (j * cw + lane) < n_rem
                ok = col_ok if not_last is None else jnp.logical_or(not_last, col_ok)
            if row_ok is not None:
                ok = row_ok if ok is None else jnp.logical_and(ok, row_ok)
            if ok is not None:
                g = jnp.where(ok, g, jnp.float32(1.0))
                p = jnp.where(ok, p, jnp.float32(1.0))
                if weighted:
                    w = jnp.where(ok, w, jnp.float32(0.0))

            a = jnp.abs((g - p) / g)
            gi = j % nacc
            if weighted:
                num_acc[gi] = num_acc[gi] + a * w
                den_acc[gi] = den_acc[gi] + w
            else:
                num_acc[gi] = num_acc[gi] + a

        for gi in range(nacc):
            num_ref[:, gi * cw:(gi + 1) * cw] = num_acc[gi]
            if weighted:
                den_ref[:, gi * cw:(gi + 1) * cw] = den_acc[gi]

    return kernel


def absrel(gt, pred, weights=None, mask=None, *, tile_n=None, fold=True, max_tb=_MAX_TB):
    """Pallas implementation of AbsRel.forward (tile_n / fold / max_tb are tuning knobs)."""
    if mask is not None:
        # TODO(synk): boolean advanced indexing `absrel[mask]` flattens the tensor and is
        # incompatible with the per-batch reduction; no clean Pallas equivalent.
        raise NotImplementedError("mask path not supported in the Pallas kernel")

    B = gt.shape[0]
    n = 1
    for d in gt.shape[1:]:
        n *= d

    inputs_nd = [gt, pred] + ([weights] if weights is not None else [])
    itemsizes = [jnp.dtype(x.dtype).itemsize for x in inputs_nd]
    smin = _sublane_min(itemsizes)

    # Row folding: (B, n) -> (R, n_cols) with R = B*G, metadata-only reshape.
    G = _choose_fold(B, n, smin) if fold else 1
    R = B * G
    n_cols = n // G
    flat = [x.reshape(R, n_cols) for x in inputs_nd]

    TB, nb, row_mask = _pick_tb(R, smin, max_tb)
    TN = _pick_tn(n_cols, TB, itemsizes, tile_n)
    kt = pl.cdiv(n_cols, TN)
    n_rem = n_cols - (kt - 1) * TN
    cw = TN if n_cols < _LANE else _LANE
    chunks = TN // cw
    nacc = min(_NACC, chunks)
    W = nacc * cw
    rows_rem = R - (nb - 1) * TB
    R_out = nb * TB

    in_spec = pl.BlockSpec((TB, TN), lambda b, k: (b, k))
    out_spec = pl.BlockSpec((TB, W), lambda b, k: (b, 0))   # resident accumulator

    n_out = 2 if weights is not None else 1
    est = 2 * TB * TN * sum(itemsizes) + n_out * 2 * TB * W * 4 + (2 << 20)
    cparams = pltpu.CompilerParams(
        dimension_semantics=("parallel", "arbitrary"),
        vmem_limit_bytes=int(min(96 << 20, max(est, 16 << 20))),
    )

    kernel = _make_kernel(weighted=weights is not None, tb=TB, cw=cw, chunks=chunks,
                          nacc=nacc, n_rem=n_rem, kt=kt, nb=nb, rows_rem=rows_rem,
                          row_mask=row_mask)

    if weights is None:
        partial = pl.pallas_call(
            kernel,
            out_shape=jax.ShapeDtypeStruct((R_out, W), jnp.float32),
            grid=(nb, kt),
            in_specs=[in_spec, in_spec],
            out_specs=out_spec,
            compiler_params=cparams,
        )(*flat)
        row_sums = jnp.sum(partial[:R], axis=-1).reshape(B, G).sum(axis=-1)
        return jnp.mean(row_sums / jnp.float32(n))
    else:
        num, den = pl.pallas_call(
            kernel,
            out_shape=(jax.ShapeDtypeStruct((R_out, W), jnp.float32),
                       jax.ShapeDtypeStruct((R_out, W), jnp.float32)),
            grid=(nb, kt),
            in_specs=[in_spec, in_spec, in_spec],
            out_specs=(out_spec, out_spec),
            compiler_params=cparams,
        )(*flat)
        num_rows = jnp.sum(num[:R], axis=-1).reshape(B, G).sum(axis=-1)
        den_rows = jnp.sum(den[:R], axis=-1).reshape(B, G).sum(axis=-1)
        return jnp.mean(num_rows / den_rows)


if __name__ == "__main__":
    key = jax.random.PRNGKey(0)
    k1, k2, k3 = jax.random.split(key, 3)

    # --- Primary shapes (NCHW) ---
    shape = (2, 4, 16, 16)
    gt = jax.random.uniform(k1, shape, jnp.float32, minval=0.5, maxval=2.0)
    pred = gt + 0.1 * jax.random.normal(k2, shape, dtype=jnp.float32)
    weights = jax.random.uniform(k3, shape, jnp.float32, minval=0.1, maxval=1.0)

    # Pure-JAX reference (mirrors the PyTorch forward exactly).
    ar = jnp.abs((gt - pred) / gt)
    ref_unweighted = jnp.mean(jnp.mean(ar, axis=(1, 2, 3)))
    ref_weighted = jnp.mean(
        jnp.sum(ar * weights, axis=(1, 2, 3)) / jnp.sum(weights, axis=(1, 2, 3)))

    out_unweighted = jax.block_until_ready(absrel(gt, pred))
    out_weighted = jax.block_until_ready(absrel(gt, pred, weights))
    assert jnp.allclose(out_unweighted, ref_unweighted, rtol=1e-5, atol=1e-6), (
        out_unweighted, ref_unweighted)
    assert jnp.allclose(out_weighted, ref_weighted, rtol=1e-5, atol=1e-6), (
        out_weighted, ref_weighted)

    # Multi-step accumulation along the reduction axis (kt > 1, 2 accumulator chains).
    out_tiled = jax.block_until_ready(absrel(gt, pred, weights, tile_n=256, fold=False))
    assert jnp.allclose(out_tiled, ref_weighted, rtol=1e-5, atol=1e-6), (
        out_tiled, ref_weighted)

    # Ragged lane tail (n not a multiple of 128): chunk-gated column mask.
    shape2 = (3, 3, 17, 19)   # n = 969
    g2 = jax.random.uniform(k1, shape2, jnp.float32, minval=0.5, maxval=2.0)
    p2 = g2 + 0.1 * jax.random.normal(k2, shape2, dtype=jnp.float32)
    ar2 = jnp.abs((g2 - p2) / g2)
    ref2 = jnp.mean(jnp.mean(ar2, axis=(1, 2, 3)))
    out2 = jax.block_until_ready(absrel(g2, p2))
    assert jnp.allclose(out2, ref2, rtol=1e-5, atol=1e-6), (out2, ref2)

    # Ragged rows (batch not tileable by the sublane-aligned row block): row mask path.
    shape3 = (20, 2, 8, 16)   # n = 256
    g3 = jax.random.uniform(k1, shape3, jnp.float32, minval=0.5, maxval=2.0)
    p3 = g3 + 0.1 * jax.random.normal(k2, shape3, dtype=jnp.float32)
    w3 = jax.random.uniform(k3, shape3, jnp.float32, minval=0.1, maxval=1.0)
    ar3 = jnp.abs((g3 - p3) / g3)
    ref3 = jnp.mean(
        jnp.sum(ar3 * w3, axis=(1, 2, 3)) / jnp.sum(w3, axis=(1, 2, 3)))
    out3 = jax.block_until_ready(absrel(g3, p3, w3, fold=False, max_tb=8))
    assert jnp.allclose(out3, ref3, rtol=1e-5, atol=1e-6), (out3, ref3)

    print("KERNEL_OK")
</pallas_src>

<mosaic_0001>
module attributes {stable_mosaic.version = 11 : i64} {
  func.func @kernel(%arg0: i32, %arg1: i32, %arg2: memref<8x128xf32, #tpu.memory_space<vmem>>, %arg3: memref<8x128xf32, #tpu.memory_space<vmem>>, %arg4: memref<8x128xf32, #tpu.memory_space<vmem>>) attributes {dimension_semantics = [#tpu.dimension_semantics<parallel>, #tpu.dimension_semantics<arbitrary>], iteration_bounds = array<i64: 2, 1>, scalar_prefetch = 0 : i64, scratch_operands = 0 : i64, tpu.core_type = #tpu.core_type<tc>, window_params = [{transform_indices = @transform_0, window_bounds = array<i64: 8, 128>}, {transform_indices = @transform_1, window_bounds = array<i64: 8, 128>}, {transform_indices = @transform_2, window_bounds = array<i64: 8, 128>}]} {
    %c0_i32 = arith.constant 0 : i32
    %0 = arith.cmpi eq, %arg1, %c0_i32 : i32
    %1 = arith.extui %0 : i1 to i32
    %c0_i32_0 = arith.constant 0 : i32
    %2 = arith.cmpi ne, %1, %c0_i32_0 : i32
    scf.if %2 {
      %cst = arith.constant 0.000000e+00 : f32
      %11 = vector.broadcast %cst : f32 to vector<8x128xf32>
      %c0_8 = arith.constant 0 : index
      %c0_9 = arith.constant 0 : index
      %12 = vector.load %arg4[%c0_8, %c0_9] : memref<8x128xf32, #tpu.memory_space<vmem>>, vector<8x128xf32>
      tpu.vector_store %arg4[%c0_8, %c0_9], %11 {strides = array<i32>} : memref<8x128xf32, #tpu.memory_space<vmem>>, vector<8x128xf32>,
    } else {
    }
    %c0 = arith.constant 0 : index
    %c0_1 = arith.constant 0 : index
    %3 = vector.load %arg4[%c0, %c0_1] : memref<8x128xf32, #tpu.memory_space<vmem>>, vector<8x128xf32>
    %c0_2 = arith.constant 0 : index
    %c0_3 = arith.constant 0 : index
    %4 = vector.load %arg2[%c0_2, %c0_3] : memref<8x128xf32, #tpu.memory_space<vmem>>, vector<8x128xf32>
    %c0_4 = arith.constant 0 : index
    %c0_5 = arith.constant 0 : index
    %5 = vector.load %arg3[%c0_4, %c0_5] : memref<8x128xf32, #tpu.memory_space<vmem>>, vector<8x128xf32>
    %6 = arith.subf %4, %5 : vector<8x128xf32>
    %7 = arith.divf %6, %4 : vector<8x128xf32>
    %8 = math.absf %7 : vector<8x128xf32>
    %9 = arith.addf %3, %8 : vector<8x128xf32>
    %c0_6 = arith.constant 0 : index
    %c0_7 = arith.constant 0 : index
    %10 = vector.load %arg4[%c0_6, %c0_7] : memref<8x128xf32, #tpu.memory_space<vmem>>, vector<8x128xf32>
    tpu.vector_store %arg4[%c0_6, %c0_7], %9 {strides = array<i32>} : memref<8x128xf32, #tpu.memory_space<vmem>>, vector<8x128xf32>,
    return
  }
  func.func @transform_0(%arg0: i32, %arg1: i32) -> (i32, i32) {
    %c0_i32 = arith.constant 0 : i32
    return %arg0, %arg1 : i32, i32
  }
  func.func @transform_1(%arg0: i32, %arg1: i32) -> (i32, i32) {
    %c0_i32 = arith.constant 0 : i32
    return %arg0, %arg1 : i32, i32
  }
  func.func @transform_2(%arg0: i32, %arg1: i32) -> (i32, i32) {
    %c0_i32 = arith.constant 0 : i32
    %c0_i32_0 = arith.constant 0 : i32
    return %arg0, %c0_i32 : i32, i32
  }
}

</mosaic_0001>

<llo_original>
// kernel: tpu_custom_call.1
$region0: #{tpu_custom_call.1}
  #allocation0 [shape = 'u32[]', space=smem, size = 0x4, offset = 0x4, fixed_abs, tag = 'smem constant byte address 0x4 - core index']
  #allocation1 [shape = 'u32[72,128]{1,0:T(1,128)}', space=vmem, size = 0x9000, scoped, tag = 'internal scratch']
  %s0 = inlined_call_operand.hbm [shape: f32[16,128], index: 0, kind: input, shape index: {}]
  %s1 = inlined_call_operand.hbm [shape: f32[16,128], index: 1, kind: input, shape index: {}]
  %s2 = inlined_call_operand.hbm [shape: f32[16,128], index: 2, kind: output, shape index: {}]
  %s3 = sld [smem:[#allocation0]]
  $region53: #{tpu_custom_call.1} parent=0
    _
  %s5 = ssub.s32 1, %s3
  %s6 = scalar_select 0, %s5, %s3
  $region1: #{tpu_custom_call.1} parent=0
    #allocation2 [shape = 'u8[8192]{0}', space=vmem, size = 0x2000, scoped, tag = 'input window, operand 0']
    #allocation3 [shape = 's32[2]{0}', space=sflag, size = 0x8, scoped, tag = 'scoped memory for tpu_custom_call.1']
    #allocation4 [shape = 's32[2]{0}', space=sflag, size = 0x8, scoped, tag = 'scoped memory for tpu_custom_call.1']
    #allocation5 [shape = 'u8[8192]{0}', space=vmem, size = 0x2000, scoped, tag = 'input window, operand 1']
    #allocation6 [shape = 's32[2]{0}', space=sflag, size = 0x8, scoped, tag = 'scoped memory for tpu_custom_call.1']
    #allocation7 [shape = 'u8[8192]{0}', space=vmem, size = 0x2000, scoped, tag = 'output window, operand 0']
    %7 = vsyncpa [#allocation3], 0
    %s8 = scalar_lea.sflag [#allocation3], 1
    %9 = vsyncpa %s8, 0
    %10 = vsyncpa [#allocation6], 0
    %s11 = scalar_lea.sflag [#allocation6], 1
    %12 = vsyncpa %s11, 0
    %13 = vsyncpa [#allocation4], 0
    %s14 = scalar_lea.sflag [#allocation4], 1
    %15 = vsyncpa %s14, 0
    loop: start=0, step=1, limit=4
    $region2: #{tpu_custom_call.1} parent=1 // loop_pre_header
      _
    $region3: #{tpu_custom_call.1} parent=1 // loop_header
      %s17 = sphi 0, %s21
      %p18 = scmp.ge.s32.totalorder %s17, 4
      %s24 = sphi 0, %s36
      %s25 = sphi 0, %s32
      %s26 = sphi 0, %s24
      %s27 = sphi 0, %s25
      %s28 = sphi 0, %s26
      %s29 = sphi 0, %s27
      %s41 = sphi 0, %s43
      %s44 = sphi 0, %s41
      %s45 = sphi 0, %s44
      %s61 = sphi 0, %s45
      %s69 = sphi 0, %s71
      %s72 = sphi 0, %s69
      %s73 = sphi 0, %s72
      %s89 = sphi 0, %s73
      %s95 = sphi 0, %s97
      %s98 = sphi 0, %s95
      %s99 = sphi 0, %s98
      %s115 = sphi 0, %s99
    $region4: #{tpu_custom_call.1} parent=1 // loop_header_branch
      %20 = sbr.rel (%p18) target = $region8
    $region5: #{tpu_custom_call.1} parent=1 // loop_body
      %s22 = ssub.s32 %s17, 1
      %s23 = ssub.s32 %s17, 2
      %s30 = sadd.s32 1, %s25
      %p31 = scmp.ge.s32.totalorder %s30, 1
      %s32 = scalar_select %p31, 0, %s30
      %s33 = sadd.s32 1, %s24
      %s34 = scalar_select %p31, %s33, %s24
      %p35 = scmp.ge.s32.totalorder %s34, 2
      %s36 = scalar_select %p35, 0, %s34
      %s37 = ssub.s32 %s24, %s36
      %s38 = ssub.s32 %s25, %s32
      %s39 = sor.u32 %s37, %s38
      %p40 = scmp.eq.s32.totalorder %s39, 0
      %s42 = sadd.s32 %s41, 1
      %s43 = scalar_select %p40, %s41, %s42
      %p46 = pneg %p40
      %p47 = scmp.eq.s32.totalorder %s17, 1
      %p48 = por %p46, %p47
      %p49 = scmp.ne.s32.totalorder %s41, %s44
      %p50 = scmp.eq.s32.totalorder %s17, 0
      %p51 = por %p49, %p50
      %p52 = scmp.ne.s32.totalorder %s41, %s44
      %p53 = scmp.eq.s32.totalorder %s22, 1
      %p54 = por %p52, %p53
      %p55 = scmp.ne.s32.totalorder %s44, %s45
      %p56 = scmp.eq.s32.totalorder %s22, 0
      %p57 = por %p55, %p56
      %p58 = scmp.ne.s32.totalorder %s44, %s45
      %p59 = scmp.eq.s32.totalorder %s23, 1
      %p60 = por %p58, %p59
      %p62 = scmp.ne.s32.totalorder %s45, %s61
      %p63 = scmp.eq.s32.totalorder %s23, 0
      %p64 = por %p62, %p63
      %s65 = ssub.s32 %s24, %s36
      %s66 = ssub.s32 %s25, %s32
      %s67 = sor.u32 %s65, %s66
      %p68 = scmp.eq.s32.totalorder %s67, 0
      %s70 = sadd.s32 %s69, 1
      %s71 = scalar_select %p68, %s69, %s70
      %p74 = pneg %p68
      %p75 = scmp.eq.s32.totalorder %s17, 1
      %p76 = por %p74, %p75
      %p77 = scmp.ne.s32.totalorder %s69, %s72
      %p78 = scmp.eq.s32.totalorder %s17, 0
      %p79 = por %p77, %p78
      %p80 = scmp.ne.s32.totalorder %s69, %s72
      %p81 = scmp.eq.s32.totalorder %s22, 1
      %p82 = por %p80, %p81
      %p83 = scmp.ne.s32.totalorder %s72, %s73
      %p84 = scmp.eq.s32.totalorder %s22, 0
      %p85 = por %p83, %p84
      %p86 = scmp.ne.s32.totalorder %s72, %s73
      %p87 = scmp.eq.s32.totalorder %s23, 1
      %p88 = por %p86, %p87
      %p90 = scmp.ne.s32.totalorder %s73, %s89
      %p91 = scmp.eq.s32.totalorder %s23, 0
      %p92 = por %p90, %p91
      %s93 = ssub.s32 %s24, %s36
      %p94 = scmp.eq.s32.totalorder %s93, 0
      %s96 = sadd.s32 %s95, 1
      %s97 = scalar_select %p94, %s95, %s96
      %p100 = pneg %p94
      %p101 = scmp.eq.s32.totalorder %s17, 1
      %p102 = por %p100, %p101
      %p103 = scmp.ne.s32.totalorder %s95, %s98
      %p104 = scmp.eq.s32.totalorder %s17, 0
      %p105 = por %p103, %p104
      %p106 = scmp.ne.s32.totalorder %s95, %s98
      %p107 = scmp.eq.s32.totalorder %s22, 1
      %p108 = por %p106, %p107
      %p109 = scmp.ne.s32.totalorder %s98, %s99
      %p110 = scmp.eq.s32.totalorder %s22, 0
      %p111 = por %p109, %p110
      %p112 = scmp.ne.s32.totalorder %s98, %s99
      %p113 = scmp.eq.s32.totalorder %s23, 1
      %p114 = por %p112, %p113
      %p116 = scmp.ne.s32.totalorder %s99, %s115
      %p117 = scmp.eq.s32.totalorder %s23, 0
      %p118 = por %p116, %p117
      %p119 = scmp.le.s32.totalorder 1, %s17
      %p120 = scmp.lt.s32.totalorder %s17, 3
      %p121 = pnand %p119, %p120
      %p122 = pneg %p121
      // Predicated region
      $region9: #{tpu_custom_call.1} parent=5 // pred_check
        _
      $region10: #{tpu_custom_call.1} parent=5 // pred_check_branch
        %124 = sbr.rel (%p121) target = $region12
      $region11: #{tpu_custom_call.1} parent=5 // pred_region
        %s125 = ssub.s32 %s17, 1
      $region12: #{tpu_custom_call.1} parent=5 // pred_fallthru
        _
      %p126 = scmp.lt.s32.totalorder %s17, 2
      // Predicated region
      $region13: #{tpu_custom_call.1} parent=5 // pred_check
        %p127 = pneg %p126
      $region14: #{tpu_custom_call.1} parent=5 // pred_check_branch
        %129 = sbr.rel (%p127) target = $region16
      $region15: #{tpu_custom_call.1} parent=5 // pred_region
        // Predicated region
        $region17: #{tpu_custom_call.1} parent=15 // pred_check
          %p130 = pneg %p51
        $region18: #{tpu_custom_call.1} parent=15 // pred_check_branch
          %132 = sbr.rel (%p130) target = $region20
        $region19: #{tpu_custom_call.1} parent=15 // pred_region
          %s133 = sand.u32 %s41, 1
          %s134 = scalar_lea.sflag [#allocation3], %s133
          %s135 = sand.u32 %s41, 1
          %s136 = smul.addr %s135, 8
          %s137 = scalar_lea.vmem [#allocation2], %s136
          %139 = vsyncadd %s134, 0
          %s140 = sadd.s32 %s25, %s24
          %s141 = smul.addr %s140, 8
          %s142 = scalar_lea.hbm %s0, %s141
          %s144 = sshll.u32 %s142, 4
          %s145 = int_to_ptr.hbm [resolvable:$true] %s144
          %s146 = sshll.u32 %s137, 4
          %s147 = int_to_ptr.vmem [resolvable:$true] %s146
          %149 = dma.hbm_to_vmem [thread:$0]  %s145, 128, %s147, %s134
        $region20: #{tpu_custom_call.1} parent=15 // pred_fallthru
          _
        // Predicated region
        $region21: #{tpu_custom_call.1} parent=15 // pred_check
          %p150 = pneg %p79
        $region22: #{tpu_custom_call.1} parent=15 // pred_check_branch
          %152 = sbr.rel (%p150) target = $region24
        $region23: #{tpu_custom_call.1} parent=15 // pred_region
          %s153 = sand.u32 %s69, 1
          %s154 = scalar_lea.sflag [#allocation6], %s153
          %s155 = sand.u32 %s69, 1
          %s156 = smul.addr %s155, 8
          %s157 = scalar_lea.vmem [#allocation5], %s156
          %159 = vsyncadd %s154, 0
          %s160 = sadd.s32 %s25, %s24
          %s161 = smul.addr %s160, 8
          %s162 = scalar_lea.hbm %s1, %s161
          %s164 = sshll.u32 %s162, 4
          %s165 = int_to_ptr.hbm [resolvable:$true] %s164
          %s166 = sshll.u32 %s157, 4
          %s167 = int_to_ptr.vmem [resolvable:$true] %s166
          %169 = dma.hbm_to_vmem [thread:$0]  %s165, 128, %s167, %s154
        $region24: #{tpu_custom_call.1} parent=15 // pred_fallthru
          _
      $region16: #{tpu_custom_call.1} parent=5 // pred_fallthru
        _
      %p170 = scmp.le.s32.totalorder 1, %s17
      %p171 = scmp.lt.s32.totalorder %s17, 3
      %p172 = pnand %p170, %p171
      %p173 = pneg %p172
      // Predicated region
      $region25: #{tpu_custom_call.1} parent=5 // pred_check
        _
      $region26: #{tpu_custom_call.1} parent=5 // pred_check_branch
        %175 = sbr.rel (%p172) target = $region28
      $region27: #{tpu_custom_call.1} parent=5 // pred_region
        %s176 = ssub.s32 %s17, 1
        %s177 = sand.u32 %s44, 1
        %s178 = scalar_lea.sflag [#allocation3], %s177
        %s179 = sand.u32 %s44, 1
        %s180 = smul.addr %s179, 8
        %s181 = scalar_lea.vmem [#allocation2], %s180
        // Predicated region
        $region29: #{tpu_custom_call.1} parent=27 // pred_check
          %p182 = pneg %p57
        $region30: #{tpu_custom_call.1} parent=27 // pred_check_branch
          %184 = sbr.rel (%p182) target = $region32
        $region31: #{tpu_custom_call.1} parent=27 // pred_region
          %186 = dma.done %s178, 128
        $region32: #{tpu_custom_call.1} parent=27 // pred_fallthru
          _
        %s187 = sand.u32 %s72, 1
        %s188 = scalar_lea.sflag [#allocation6], %s187
        %s189 = sand.u32 %s72, 1
        %s190 = smul.addr %s189, 8
        %s191 = scalar_lea.vmem [#allocation5], %s190
        // Predicated region
        $region33: #{tpu_custom_call.1} parent=27 // pred_check
          %p192 = pneg %p85
        $region34: #{tpu_custom_call.1} parent=27 // pred_check_branch
          %194 = sbr.rel (%p192) target = $region36
        $region35: #{tpu_custom_call.1} parent=27 // pred_region
          %196 = dma.done %s188, 128
        $region36: #{tpu_custom_call.1} parent=27 // pred_fallthru
          _
        %s197 = sand.u32 %s44, 1
        %s198 = scalar_lea.sflag [#allocation3], %s197
        %s199 = sand.u32 %s44, 1
        %s200 = smul.addr %s199, 8
        %s201 = scalar_lea.vmem [#allocation2], %s200
        %p202 = pneg %p57
        %p203 = pneg %p54
        %s204 = sand.u32 %s72, 1
        %s205 = scalar_lea.sflag [#allocation6], %s204
        %s206 = sand.u32 %s72, 1
        %s207 = smul.addr %s206, 8
        %s208 = scalar_lea.vmem [#allocation5], %s207
        %p209 = pneg %p85
        %p210 = pneg %p82
        %p211 = pneg %p111
        %p212 = pneg %p108
        %s213 = sand.u32 %s98, 1
        %s214 = scalar_lea.sflag [#allocation4], %s213
        %s215 = sand.u32 %s98, 1
        %s216 = smul.addr %s215, 8
        %s217 = scalar_lea.vmem [#allocation7], %s216
        %p218 = scmp.eq.s32.totalorder %s27, 0
        // Predicated region
        $region37: #{tpu_custom_call.1} parent=27 // pred_check
          %p219 = pneg %p218
        $region38: #{tpu_custom_call.1} parent=27 // pred_check_branch
          %221 = sbr.rel (%p219) target = $region40
        $region39: #{tpu_custom_call.1} parent=27 // pred_region
          %222 = vst [vmem:[%s217] sm:$0xff] 0.0
        $region40: #{tpu_custom_call.1} parent=27 // pred_fallthru
          _
        %v223 = vld [vmem:[%s217] sm:$0xff]
        %v224 = vld [vmem:[%s181] sm:$0xff]
        %v225 = vld [vmem:[%s191] sm:$0xff]
        %v226 = vsub.f32 %v224, %v225
        %v227 = vrcp.pop %v224
        %v228 = vmul.f32 %v224, %v227
        %v229 = vsub.f32 1.0, %v228
        %v230 = vmul.f32 %v227, %v229
        %v231 = vadd.f32 %v227, %v230
        %vm232 = vweird.f32 %v224
        %vm233 = vweird.f32 %v227
        %vm234 = vmor %vm232, %vm233
        %v235 = vsel %vm234, %v227, %v231
        %v236 = vand.u32 2147483647, %v224
        %vm237 = vcmp.eq.f32.partialorder %v236, 8.507059e+37
        %v238 = vand.u32 %v224, 2147483648
        %v239 = vor.u32 1.1754944e-38, %v238
        %v240 = vsel %vm237, %v239, %v235
        %v241 = vmul.f32 %v226, %v240
        %v242 = vand.u32 2147483647, %v241
        %v243 = vadd.f32 %v223, %v242
        %244 = vst [vmem:[%s217] sm:$0xff] %v243
        %s245 = sand.u32 %s98, 1
        %s246 = scalar_lea.sflag [#allocation4], %s245
        %s247 = sand.u32 %s98, 1
        %s248 = smul.addr %s247, 8
        %s249 = scalar_lea.vmem [#allocation7], %s248
        // Predicated region
        $region41: #{tpu_custom_call.1} parent=27 // pred_check
          %p250 = pneg %p108
        $region42: #{tpu_custom_call.1} parent=27 // pred_check_branch
          %252 = sbr.rel (%p250) target = $region44
        $region43: #{tpu_custom_call.1} parent=27 // pred_region
          %254 = vsyncadd %s246, 0
          %s255 = smul.addr %s26, 8
          %s256 = scalar_lea.hbm %s2, %s255
          %s258 = sshll.u32 %s249, 4
          %s259 = int_to_ptr.vmem [resolvable:$true] %s258
          %s260 = sshll.u32 %s256, 4
          %s261 = int_to_ptr.hbm [resolvable:$true] %s260
          %263 = dma.vmem_to_hbm [thread:$0]  %s259, 128, %s261, %s246
        $region44: #{tpu_custom_call.1} parent=27 // pred_fallthru
          _
      $region28: #{tpu_custom_call.1} parent=5 // pred_fallthru
        _
      %p264 = scmp.le.s32.totalorder 2, %s17
      // Predicated region
      $region45: #{tpu_custom_call.1} parent=5 // pred_check
        %p265 = pneg %p264
      $region46: #{tpu_custom_call.1} parent=5 // pred_check_branch
        %267 = sbr.rel (%p265) target = $region48
      $region47: #{tpu_custom_call.1} parent=5 // pred_region
        %s268 = ssub.s32 %s17, 2
        // Predicated region
        $region49: #{tpu_custom_call.1} parent=47 // pred_check
          %p269 = pneg %p114
        $region50: #{tpu_custom_call.1} parent=47 // pred_check_branch
          %271 = sbr.rel (%p269) target = $region52
        $region51: #{tpu_custom_call.1} parent=47 // pred_region
          %s272 = sand.u32 %s99, 1
          %s273 = scalar_lea.sflag [#allocation4], %s272
          %s274 = sand.u32 %s99, 1
          %s275 = smul.addr %s274, 8
          %s276 = scalar_lea.vmem [#allocation7], %s275
          %278 = dma.done %s273, 128
        $region52: #{tpu_custom_call.1} parent=47 // pred_fallthru
          _
      $region48: #{tpu_custom_call.1} parent=5 // pred_fallthru
        _
    $region6: #{tpu_custom_call.1} parent=1 // loop_footer
      %s21 = sadd.s32 1, %s17
    $region7: #{tpu_custom_call.1} parent=1 // loop_footer_branch
      %16 = sbr.rel target = $region3
    $region8: #{tpu_custom_call.1} parent=1 // loop_exit
      _
    %279 = vsyncpa [#allocation3], 1
    %s280 = scalar_lea.sflag [#allocation3], 1
    %281 = vsyncpa %s280, 1
    %282 = vsyncpa [#allocation6], 1
    %s283 = scalar_lea.sflag [#allocation6], 1
    %284 = vsyncpa %s283, 1
    %285 = vsyncpa [#allocation4], 1
    %s286 = scalar_lea.sflag [#allocation4], 1
    %287 = vsyncpa %s286, 1

</llo_original>
